<compile_context>
chip_gen: v7x
topology: tpu7x:2x2x1
jax: 0.10.0
libtpu: 0.0.40
codegen_flags: <defaults>
</compile_context>

<pallas_src>
import jax
import jax.numpy as jnp
from jax import lax
from jax.experimental import pallas as pl
from jax.experimental.pallas import tpu as pltpu

MARGIN = 0.3
BIG = 99999999.0
EPS = 1e-12  # F.normalize eps


def _round_up(x, m):
    return ((x + m - 1) // m) * m


def _make_kernel(b_real, tm, bp, dp):
    """Build the kernel closed over static sizes (real batch, tile, padded dims)."""
    inv_b = 1.0 / float(b_real)
    align = tm & (-tm)  # largest power-of-two divisor of tm (>= 8)

    def kernel(x_hbm, ta_ref, tg_ref, out_ref, gal_ref, acc_ref, dma_sem):
        pid = pl.program_id(0)

        # ---- one-time work: pull the full feature matrix HBM -> VMEM once,
        #      L2-normalize it in place, zero the scalar accumulator.
        @pl.when(pid == 0)
        def _():
            cp = pltpu.make_async_copy(x_hbm, gal_ref, dma_sem)
            cp.start()
            cp.wait()
            xg = gal_ref[...]                                  # (bp, dp) f32
            sq = jnp.sum(xg * xg, axis=1, keepdims=True)
            inv = lax.rsqrt(jnp.maximum(sq, EPS * EPS))        # EUP, == 1/max(||x||, eps)
            gal_ref[...] = xg * inv
            acc_ref[0, 0] = 0.0

        # ---- anchor tile = rows [pid*tm, pid*tm+tm) of the resident
        #      normalized gallery (anchors == gallery on a single device).
        start = pl.multiple_of(pid * tm, align)
        xa_n = gal_ref[pl.ds(start, tm), :]                    # (tm, dp) f32

        # ---- cosine-distance slab: NT matmul, contract feature dims directly.
        sim = lax.dot_general(
            xa_n, gal_ref[...],
            dimension_numbers=(((1,), (1,)), ((), ())),
            preferred_element_type=jnp.float32)                # (tm, bp)
        dist = 1.0 - sim

        # ---- positive / negative masks via broadcast compare; padded gallery
        #      columns masked with a lane iota (no float mask temporaries).
        ta = ta_ref[...]                                       # (tm, 1) int32
        tg = tg_ref[...]                                       # (1, bp) int32
        same = ta == tg                                        # (tm, bp) bool
        col = lax.broadcasted_iota(jnp.int32, (tm, bp), 1)
        valid_g = col < b_real
        pos = jnp.logical_and(same, valid_g)
        neg = jnp.logical_and(jnp.logical_not(same), valid_g)

        # ---- hard example mining (fused select + row reduce, stays in vregs).
        dist_ap = jnp.max(jnp.where(pos, dist, -BIG), axis=1, keepdims=True)
        dist_an = jnp.min(jnp.where(neg, dist, BIG), axis=1, keepdims=True)

        # MarginRankingLoss with y=1: relu(dist_ap - dist_an + margin)
        hinge = jnp.maximum(dist_ap - dist_an + MARGIN, 0.0)   # (tm, 1)

        # mask padded anchor rows out of the sum
        row = lax.broadcasted_iota(jnp.int32, (tm, 1), 0) + pid * tm
        hinge = jnp.where(row < b_real, hinge, 0.0)

        acc_ref[0, 0] += jnp.sum(hinge)

        # ---- finalize: mean over the real batch, written once to SMEM output.
        @pl.when(pid == pl.num_programs(0) - 1)
        def _():
            out_ref[0, 0] = acc_ref[0, 0] * inv_b

    return kernel


def triplet_loss(inputs, targets, *, tile_m=128):
    """inputs: (B, D) float, targets: (B,) int -> scalar float32 loss.

    tile_m: anchor-tile rows. The resident normalized gallery (Bp*Dp*4 bytes,
    single copy) plus the (tile_m, Bp) distance slab must fit the scoped VMEM
    limit (v7x physical VMEM is only 64 MiB) -- re-derive tile_m for very
    large batches / feature dims.
    """
    b, d = inputs.shape
    dp = _round_up(d, 128)                # lane-align the feature dim
    tm = min(tile_m, _round_up(b, 8))     # sublane-align the anchor tile
    bp = _round_up(b, tm)
    n_tiles = bp // tm

    x = inputs.astype(jnp.float32)
    if bp != b or dp != d:
        # zero-padding changes neither row norms nor inner products
        x = jnp.pad(x, ((0, bp - b), (0, dp - d)))
    t = targets.astype(jnp.int32)
    if bp != b:
        t = jnp.pad(t, (0, bp - b), constant_values=-1)  # value unused: iota masks pads
    ta = t.reshape(bp, 1)   # anchor labels, tiled with the anchor axis
    tg = t.reshape(1, bp)   # gallery labels, resident row (no in-kernel transpose)

    kernel = _make_kernel(b, tm, bp, dp)

    out = pl.pallas_call(
        kernel,
        out_shape=jax.ShapeDtypeStruct((1, 1), jnp.float32),
        grid_spec=pltpu.PrefetchScalarGridSpec(
            num_scalar_prefetch=0,
            grid=(n_tiles,),
            in_specs=[
                pl.BlockSpec(memory_space=pl.ANY),          # features, raw HBM (DMA'd once)
                pl.BlockSpec((tm, 1), lambda i: (i, 0)),    # anchor labels (pipelined)
                pl.BlockSpec((1, bp), lambda i: (0, 0)),    # gallery labels (resident)
            ],
            out_specs=pl.BlockSpec(memory_space=pltpu.MemorySpace.SMEM),
            scratch_shapes=[
                pltpu.VMEM((bp, dp), jnp.float32),          # normalized gallery (single copy)
                pltpu.SMEM((1, 1), jnp.float32),            # running hinge sum
                pltpu.SemaphoreType.DMA,                    # gallery load semaphore
            ],
        ),
        compiler_params=pltpu.CompilerParams(
            # Anchor axis carries a sequential scalar reduction into shared
            # SMEM scratch, so it must be "arbitrary" (not megacore-sharded).
            dimension_semantics=("arbitrary",),
        ),
    )(x, ta, tg)
    return out[0, 0]


def triplet_loss_ref(inputs, targets):
    """Pure-JAX reference matching the PyTorch module (single device)."""
    x = inputs.astype(jnp.float32)
    norm = jnp.sqrt(jnp.sum(x * x, axis=1, keepdims=True))
    xn = x / jnp.maximum(norm, EPS)
    dist = 1.0 - xn @ xn.T
    t = targets.reshape(-1, 1)
    mask_pos = (t == t.T).astype(jnp.float32)
    mask_neg = 1.0 - mask_pos
    dist_ap = jnp.max(dist - mask_neg * BIG, axis=1)
    dist_an = jnp.min(dist + mask_pos * BIG, axis=1)
    return jnp.mean(jnp.maximum(dist_ap - dist_an + MARGIN, 0.0))


if __name__ == "__main__":
    key = jax.random.PRNGKey(0)
    k1, k2, k3, k4, k5, k6 = jax.random.split(key, 6)

    # Case 1: small batch, feature dim below a full lane group (padding path,
    # single anchor tile -> init and finalize in the same grid step).
    B, D = 8, 32
    x = jax.random.normal(k1, (B, D), dtype=jnp.float32)
    tgt = jax.random.randint(k2, (B,), 0, 4, dtype=jnp.int32)
    loss = jax.block_until_ready(triplet_loss(x, tgt))
    ref = jax.block_until_ready(triplet_loss_ref(x, tgt))
    assert jnp.allclose(loss, ref, rtol=1e-4, atol=1e-5), (loss, ref)

    # Case 2: force multiple anchor tiles to exercise the grid accumulation
    # and the dynamic anchor-tile slice out of the resident gallery.
    B2, D2 = 24, 32
    x2 = jax.random.normal(k3, (B2, D2), dtype=jnp.float32)
    tgt2 = jax.random.randint(k4, (B2,), 0, 5, dtype=jnp.int32)
    loss2 = jax.block_until_ready(triplet_loss(x2, tgt2, tile_m=8))
    ref2 = jax.block_until_ready(triplet_loss_ref(x2, tgt2))
    assert jnp.allclose(loss2, ref2, rtol=1e-4, atol=1e-5), (loss2, ref2)

    # Case 3: lane-aligned feature dim (no D padding), two tiles of 16 rows.
    B3, D3 = 32, 128
    x3 = jax.random.normal(k5, (B3, D3), dtype=jnp.float32)
    tgt3 = jax.random.randint(k6, (B3,), 0, 6, dtype=jnp.int32)
    loss3 = jax.block_until_ready(triplet_loss(x3, tgt3, tile_m=16))
    ref3 = jax.block_until_ready(triplet_loss_ref(x3, tgt3))
    assert jnp.allclose(loss3, ref3, rtol=1e-4, atol=1e-5), (loss3, ref3)

    print("KERNEL_OK")
</pallas_src>

<mosaic_0001>
module attributes {stable_mosaic.version = 11 : i64} {
  func.func @kernel(%arg0: i32, %arg1: memref<8x128xf32, #tpu.memory_space<any>>, %arg2: memref<8x1xi32, #tpu.memory_space<vmem>>, %arg3: memref<1x8xi32, #tpu.memory_space<vmem>>, %arg4: memref<1x1xf32, #tpu.memory_space<smem>>, %arg5: memref<8x128xf32, #tpu.memory_space<vmem>>, %arg6: memref<1x1xf32, #tpu.memory_space<smem>>, %arg7: memref<!tpu.dma_semaphore, #tpu.memory_space<semaphore_mem>>) attributes {dimension_semantics = [#tpu.dimension_semantics<arbitrary>], iteration_bounds = array<i64: 1>, scalar_prefetch = 0 : i64, scratch_operands = 3 : i64, tpu.core_type = #tpu.core_type<tc>, window_params = [{}, {transform_indices = @transform_1, window_bounds = array<i64: 8, 1>}, {pipeline_mode = #tpu.pipeline_mode<synchronous>, transform_indices = @transform_2, window_bounds = array<i64: 1, 8>}, {transform_indices = @transform_3, window_bounds = array<i64: 1, 1>}]} {
    %c0_i32 = arith.constant 0 : i32
    %0 = arith.cmpi eq, %arg0, %c0_i32 : i32
    %1 = arith.extui %0 : i1 to i32
    %c0_i32_0 = arith.constant 0 : i32
    %2 = arith.cmpi ne, %1, %c0_i32_0 : i32
    scf.if %2 {
      tpu.enqueue_dma source(%arg1 : memref<8x128xf32, #tpu.memory_space<any>>) target(%arg5 : memref<8x128xf32, #tpu.memory_space<vmem>>) target_semaphore(%arg7 : memref<!tpu.dma_semaphore, #tpu.memory_space<semaphore_mem>>)
      tpu.wait_dma2 semaphore(%arg7 : memref<!tpu.dma_semaphore, #tpu.memory_space<semaphore_mem>>) src(%arg1 : memref<8x128xf32, #tpu.memory_space<any>>) dst(%arg5 : memref<8x128xf32, #tpu.memory_space<vmem>>)
      %c0_26 = arith.constant 0 : index
      %c0_27 = arith.constant 0 : index
      %53 = vector.load %arg5[%c0_26, %c0_27] : memref<8x128xf32, #tpu.memory_space<vmem>>, vector<8x128xf32>
      %54 = arith.mulf %53, %53 : vector<8x128xf32>
      %cst_28 = arith.constant dense<0.000000e+00> : vector<8xf32>
      %55 = vector.multi_reduction <add>, %54, %cst_28 [1] : vector<8x128xf32> to vector<8xf32>
      %56 = vector.shape_cast %55 : vector<8xf32> to vector<8x1xf32>
      %cst_29 = arith.constant 1.000000e-24 : f32
      %57 = vector.broadcast %cst_29 : f32 to vector<8x1xf32>
      %58 = arith.maximumf %56, %57 : vector<8x1xf32>
      %59 = math.rsqrt %58 : vector<8x1xf32>
      %60 = vector.broadcast %59 : vector<8x1xf32> to vector<8x128xf32>
      %61 = arith.mulf %53, %60 : vector<8x128xf32>
      %c0_30 = arith.constant 0 : index
      %c0_31 = arith.constant 0 : index
      %62 = vector.load %arg5[%c0_30, %c0_31] : memref<8x128xf32, #tpu.memory_space<vmem>>, vector<8x128xf32>
      tpu.vector_store %arg5[%c0_30, %c0_31], %61 {strides = array<i32>} : memref<8x128xf32, #tpu.memory_space<vmem>>, vector<8x128xf32>,
      %cst_32 = arith.constant 0.000000e+00 : f32
      %c0_33 = arith.constant 0 : index
      %c0_34 = arith.constant 0 : index
      %63 = memref.load %arg6[%c0_33, %c0_34] : memref<1x1xf32, #tpu.memory_space<smem>>
      memref.store %cst_32, %arg6[%c0_33, %c0_34] : memref<1x1xf32, #tpu.memory_space<smem>>
    } else {
    }
    %c8_i32 = arith.constant 8 : i32
    %3 = arith.muli %arg0, %c8_i32 : i32
    %4 = tpu.assume_multiple %3, 8 : i32
    %5 = arith.index_cast %4 : i32 to index
    %c0 = arith.constant 0 : index
    %6 = vector.load %arg5[%5, %c0] : memref<8x128xf32, #tpu.memory_space<vmem>>, vector<8x128xf32>
    %c0_1 = arith.constant 0 : index
    %c0_2 = arith.constant 0 : index
    %7 = vector.load %arg5[%c0_1, %c0_2] : memref<8x128xf32, #tpu.memory_space<vmem>>, vector<8x128xf32>
    %cst = arith.constant dense<0.000000e+00> : vector<8x8xf32>
    %8 = tpu.matmul %6, %7, %cst {dimension_numbers = #tpu.dot_dimension_numbers<[1], [1], [0], [0], [0, 0, 1, 0], [], []>} : vector<8x128xf32>, vector<8x128xf32>, vector<8x8xf32> -> vector<8x8xf32>
    %cst_3 = arith.constant 1.000000e+00 : f32
    %9 = vector.broadcast %cst_3 : f32 to vector<8x8xf32>
    %10 = arith.subf %9, %8 : vector<8x8xf32>
    %c0_4 = arith.constant 0 : index
    %c0_5 = arith.constant 0 : index
    %11 = vector.load %arg2[%c0_4, %c0_5] : memref<8x1xi32, #tpu.memory_space<vmem>>, vector<8x1xi32>
    %c0_6 = arith.constant 0 : index
    %c0_7 = arith.constant 0 : index
    %12 = vector.load %arg3[%c0_6, %c0_7] : memref<1x8xi32, #tpu.memory_space<vmem>>, vector<1x8xi32>
    %13 = vector.broadcast %11 : vector<8x1xi32> to vector<8x8xi32>
    %14 = vector.broadcast %12 : vector<1x8xi32> to vector<8x8xi32>
    %15 = arith.cmpi eq, %13, %14 : vector<8x8xi32>
    %16 = tpu.iota {dimensions = array<i32: 1>} : vector<8x8xi32>
    %c8_i32_8 = arith.constant 8 : i32
    %17 = vector.broadcast %c8_i32_8 : i32 to vector<8x8xi32>
    %18 = arith.cmpi slt, %16, %17 : vector<8x8xi32>
    %19 = arith.andi %15, %18 : vector<8x8xi1>
    %cst_9 = arith.constant dense<true> : vector<8x8xi1>
    %20 = arith.xori %15, %cst_9 : vector<8x8xi1>
    %21 = arith.andi %20, %18 : vector<8x8xi1>
    %cst_10 = arith.constant -1.000000e+08 : f32
    %22 = vector.broadcast %cst_10 : f32 to vector<8x8xf32>
    %23 = arith.select %19, %10, %22 : vector<8x8xi1>, vector<8x8xf32>
    %cst_11 = arith.constant dense<0xFF800000> : vector<8xf32>
    %24 = vector.multi_reduction <maximumf>, %23, %cst_11 [1] : vector<8x8xf32> to vector<8xf32>
    %25 = vector.shape_cast %24 : vector<8xf32> to vector<8x1xf32>
    %cst_12 = arith.constant 1.000000e+08 : f32
    %26 = vector.broadcast %cst_12 : f32 to vector<8x8xf32>
    %27 = arith.select %21, %10, %26 : vector<8x8xi1>, vector<8x8xf32>
    %cst_13 = arith.constant dense<0x7F800000> : vector<8xf32>
    %28 = vector.multi_reduction <minimumf>, %27, %cst_13 [1] : vector<8x8xf32> to vector<8xf32>
    %29 = vector.shape_cast %28 : vector<8xf32> to vector<8x1xf32>
    %30 = arith.subf %25, %29 : vector<8x1xf32>
    %cst_14 = arith.constant 3.000000e-01 : f32
    %31 = vector.broadcast %cst_14 : f32 to vector<8x1xf32>
    %32 = arith.addf %30, %31 : vector<8x1xf32>
    %cst_15 = arith.constant 0.000000e+00 : f32
    %33 = vector.broadcast %cst_15 : f32 to vector<8x1xf32>
    %34 = arith.maximumf %32, %33 : vector<8x1xf32>
    %35 = tpu.iota {dimensions = array<i32: 0>} : vector<8x1xi32>
    %c8_i32_16 = arith.constant 8 : i32
    %36 = arith.muli %arg0, %c8_i32_16 : i32
    %37 = vector.broadcast %36 : i32 to vector<8x1xi32>
    %38 = arith.addi %35, %37 : vector<8x1xi32>
    %c8_i32_17 = arith.constant 8 : i32
    %39 = vector.broadcast %c8_i32_17 : i32 to vector<8x1xi32>
    %40 = arith.cmpi slt, %38, %39 : vector<8x1xi32>
    %cst_18 = arith.constant 0.000000e+00 : f32
    %41 = vector.broadcast %cst_18 : f32 to vector<8x1xf32>
    %42 = arith.select %40, %34, %41 : vector<8x1xi1>, vector<8x1xf32>
    %c0_19 = arith.constant 0 : index
    %c0_20 = arith.constant 0 : index
    %43 = memref.load %arg6[%c0_19, %c0_20] : memref<1x1xf32, #tpu.memory_space<smem>>
    %44 = vector.shape_cast %42 : vector<8x1xf32> to vector<1x8x1xf32>
    %cst_21 = arith.constant dense<0.000000e+00> : vector<1xf32>
    %45 = vector.multi_reduction <add>, %44, %cst_21 [1, 2] : vector<1x8x1xf32> to vector<1xf32>
    %46 = vector.shape_cast %45 : vector<1xf32> to vector<1x1x1xf32>
    %47 = vector.extract %46[0, 0, 0] : f32 from vector<1x1x1xf32>
    %48 = arith.addf %43, %47 : f32
    %c0_22 = arith.constant 0 : index
    %c0_23 = arith.constant 0 : index
    %49 = memref.load %arg6[%c0_22, %c0_23] : memref<1x1xf32, #tpu.memory_space<smem>>
    memref.store %48, %arg6[%c0_22, %c0_23] : memref<1x1xf32, #tpu.memory_space<smem>>
    %c0_i32_24 = arith.constant 0 : i32
    %50 = arith.cmpi eq, %arg0, %c0_i32_24 : i32
    %51 = arith.extui %50 : i1 to i32
    %c0_i32_25 = arith.constant 0 : i32
    %52 = arith.cmpi ne, %51, %c0_i32_25 : i32
    scf.if %52 {
      %c0_26 = arith.constant 0 : index
      %c0_27 = arith.constant 0 : index
      %53 = memref.load %arg6[%c0_26, %c0_27] : memref<1x1xf32, #tpu.memory_space<smem>>
      %cst_28 = arith.constant 1.250000e-01 : f32
      %54 = arith.mulf %53, %cst_28 : f32
      %c0_29 = arith.constant 0 : index
      %c0_30 = arith.constant 0 : index
      %55 = memref.load %arg4[%c0_29, %c0_30] : memref<1x1xf32, #tpu.memory_space<smem>>
      memref.store %54, %arg4[%c0_29, %c0_30] : memref<1x1xf32, #tpu.memory_space<smem>>
    } else {
    }
    return
  }
  func.func @transform_1(%arg0: i32) -> (i32, i32) {
    %c0_i32 = arith.constant 0 : i32
    %c0_i32_0 = arith.constant 0 : i32
    return %arg0, %c0_i32 : i32, i32
  }
  func.func @transform_2(%arg0: i32) -> (i32, i32) {
    %c0_i32 = arith.constant 0 : i32
    %c0_i32_0 = arith.constant 0 : i32
    %c0_i32_1 = arith.constant 0 : i32
    return %c0_i32, %c0_i32_0 : i32, i32
  }
  func.func @transform_3(%arg0: i32) -> (i32, i32) {
    %c0_i32 = arith.constant 0 : i32
    %c0_i32_0 = arith.constant 0 : i32
    %c0_i32_1 = arith.constant 0 : i32
    return %c0_i32, %c0_i32_0 : i32, i32
  }
}

</mosaic_0001>

<llo_original>
// kernel: tpu_custom_call.1
$region0: #{tpu_custom_call.1}
  #allocation0 [shape = 'u32[]', space=smem, size = 0x4, offset = 0x4, fixed_abs, tag = 'smem constant byte address 0x4 - core index']
  #allocation1 [shape = 'u32[144,128]{1,0:T(1,128)}', space=vmem, size = 0x12000, scoped, tag = 'internal scratch']
  #allocation2 [shape = 'f32[8,128]{1,0:T(8,128)}', space=vmem, size = 0x1000, scoped, tag = 'scratch operand']
  #allocation3 [shape = 'f32[1,1]{1,0:T(1,128)}', space=smem, size = 0x200, scoped, tag = 'scratch operand']
  #allocation4 [shape = 's32[1]{0}', space=sflag, size = 0x4, scoped, tag = 'scratch operand']
  #allocation7 [shape = 's32[]', space=sflag, size = 0x4, offset = 0, fixed_abs, tag = 'sflag constant byte address 0x0 - dummy sync flag']
  %s0 = inlined_call_operand.vmem [shape: f32[8,128], index: 0, kind: input, shape index: {}]
  %s1 = inlined_call_operand.vmem [shape: s32[8,1], index: 1, kind: input, shape index: {}]
  %s2 = inlined_call_operand.vmem [shape: s32[1,8], index: 2, kind: input, shape index: {}]
  %s3 = inlined_call_operand.hbm [shape: f32[1,1], index: 3, kind: output, shape index: {}]
  %s4 = sld [smem:[#allocation0]]
  $region60: #{tpu_custom_call.1} parent=0
    _
  %s6 = ssub.s32 1, %s4
  %s7 = scalar_select 0, %s6, %s4
  $region1: #{tpu_custom_call.1} parent=0
    #allocation5 [shape = 'u8[512]{0}', space=smem, size = 0x200, scoped, tag = 'output window, operand 0, single buffered']
    #allocation6 [shape = 's32[1]{0}', space=sflag, size = 0x4, scoped, tag = 'scoped memory for tpu_custom_call.1']
    %8 = vsyncpa [#allocation6], 0
    // Predicated region
    $region2: #{tpu_custom_call.1} parent=1 // pred_check
      _
    $region3: #{tpu_custom_call.1} parent=1 // pred_check_branch
      %10 = sbr.rel (0) target = $region5
    $region4: #{tpu_custom_call.1} parent=1 // pred_region
      _
    $region5: #{tpu_custom_call.1} parent=1 // pred_fallthru
      _
    // Predicated region
    $region6: #{tpu_custom_call.1} parent=1 // pred_check
      _
    $region7: #{tpu_custom_call.1} parent=1 // pred_check_branch
      %12 = sbr.rel (0) target = $region9
    $region8: #{tpu_custom_call.1} parent=1 // pred_region
      _
    $region9: #{tpu_custom_call.1} parent=1 // pred_fallthru
      _
    %p13 = scmp.eq.s32.totalorder 0, 0
    // Predicated region
    $region10: #{tpu_custom_call.1} parent=1 // pred_check
      %p14 = pneg %p13
    $region11: #{tpu_custom_call.1} parent=1 // pred_check_branch
      %16 = sbr.rel (%p14) target = $region13
    $region12: #{tpu_custom_call.1} parent=1 // pred_region
      %p18 = scmp.lt.u32.totalorder 8, 8
      %p19 = pneg %p18
      // Predicated region
      $region14: #{tpu_custom_call.1} parent=12 // pred_check
        _
      $region15: #{tpu_custom_call.1} parent=12 // pred_check_branch
        %21 = sbr.rel (%p18) target = $region17
      $region16: #{tpu_custom_call.1} parent=12 // pred_region
        %s36 = sand.u32 8, 7
        %p37 = scmp.eq.s32.totalorder %s36, 0
        // Predicated region
        $region29: #{tpu_custom_call.1} parent=16 // pred_check
          %p38 = pneg %p37
        $region30: #{tpu_custom_call.1} parent=16 // pred_check_branch
          %40 = sbr.rel (%p38) target = $region32
        $region31: #{tpu_custom_call.1} parent=16 // pred_region
          loop: start=0, step=1, limit=1
          $region33: #{tpu_custom_call.1} parent=31 // loop_pre_header
            _
          $region34: #{tpu_custom_call.1} parent=31 // loop_header
            %s42 = sphi 0, %s46
            %p43 = scmp.ge.s32.totalorder %s42, 1
            %s47 = sphi %s0, %s0
            %s48 = sphi [#allocation2], [#allocation2]
          $region35: #{tpu_custom_call.1} parent=31 // loop_header_branch
            %45 = sbr.rel (%p43) target = $region39
          $region36: #{tpu_custom_call.1} parent=31 // loop_body
            %v49 = vld [vmem:[%s47] sm:$0xff]
            %50 = vst [vmem:[%s48] sm:$0xff] %v49
          $region37: #{tpu_custom_call.1} parent=31 // loop_footer
            %s46 = sadd.s32 1, %s42
          $region38: #{tpu_custom_call.1} parent=31 // loop_footer_branch
            %41 = sbr.rel target = $region34
          $region39: #{tpu_custom_call.1} parent=31 // loop_exit
            _
        $region32: #{tpu_custom_call.1} parent=16 // pred_fallthru
          _
        %p51 = pneg %p37
        // Predicated region
        $region40: #{tpu_custom_call.1} parent=16 // pred_check
          _
        $region41: #{tpu_custom_call.1} parent=16 // pred_check_branch
          %53 = sbr.rel (%p37) target = $region43
        $region42: #{tpu_custom_call.1} parent=16 // pred_region
          %s54 = sand.u32 8, 7
        $region43: #{tpu_custom_call.1} parent=16 // pred_fallthru
          _
      $region17: #{tpu_custom_call.1} parent=12 // pred_fallthru
        _
      // Predicated region
      $region18: #{tpu_custom_call.1} parent=12 // pred_check
        %p22 = pneg %p18
      $region19: #{tpu_custom_call.1} parent=12 // pred_check_branch
        %24 = sbr.rel (%p22) target = $region21
      $region20: #{tpu_custom_call.1} parent=12 // pred_region
        %s25 = sshllo.u32 0, 8
        loop: start=0, step=1, limit=1
        $region22: #{tpu_custom_call.1} parent=20 // loop_pre_header
          _
        $region23: #{tpu_custom_call.1} parent=20 // loop_header
          %s27 = sphi 0, %s31
          %p28 = scmp.ge.s32.totalorder %s27, 1
          %s32 = sphi %s0, %s0
          %s33 = sphi [#allocation2], [#allocation2]
        $region24: #{tpu_custom_call.1} parent=20 // loop_header_branch
          %30 = sbr.rel (%p28) target = $region28
        $region25: #{tpu_custom_call.1} parent=20 // loop_body
          %v34 = vld [vmem:[%s32] sm:%s25]
          %35 = vst [vmem:[%s33] sm:%s25] %v34
        $region26: #{tpu_custom_call.1} parent=20 // loop_footer
          %s31 = sadd.s32 1, %s27
        $region27: #{tpu_custom_call.1} parent=20 // loop_footer_branch
          %26 = sbr.rel target = $region23
        $region28: #{tpu_custom_call.1} parent=20 // loop_exit
          _
      $region21: #{tpu_custom_call.1} parent=12 // pred_fallthru
        _
      // Predicated region
      $region44: #{tpu_custom_call.1} parent=12 // pred_check
        _
      $region45: #{tpu_custom_call.1} parent=12 // pred_check_branch
        %57 = sbr.rel (0) target = $region47
      $region46: #{tpu_custom_call.1} parent=12 // pred_region
        %58 = vsyncadd [#allocation4], 128
      $region47: #{tpu_custom_call.1} parent=12 // pred_fallthru
        _
      %s59 = smul.u32 8, 1
      %s60 = sshll.u32 %s59, 4
      %61 = dma.done [#allocation4], %s60
      %v62 = vld [vmem:[#allocation2] sm:$0xff]
      %v63 = vmul.f32 %v62, %v62
      %64 = vadd.xlane.f32.xlu0 %v63
      %v65 = vpop.xlane.xlu0 %64
      %v66 = vmax.f32 %v65, 1e-24
      %v67 = vrsqrt.pop %v66
      %v68 = vmul.f32 %v62, %v67
      %69 = vst [vmem:[#allocation2] sm:$0xff] %v68
      %s70 = scalar_lea.smem [#allocation3], 0
      %71 = sst [smem:[%s70]] 0.0
    $region13: #{tpu_custom_call.1} parent=1 // pred_fallthru
      _
    %s72 = smul.u32 0, 8
    %s73 = scalar_lea.vmem [#allocation2], %s72
    %v74 = vld [vmem:[%s73] sm:$0xff]
    %v75 = vld [vmem:[#allocation2] sm:$0xff]
    %76 = vmatprep.subr.mxu0 0.0
    %77 = vmatpush1.xpose.msra.mxu0 %v75
    %78 = vmatprep.subr.mxu0 0.0
    %79 = vmatpush1.xpose.msra.mxu0 0.0
    %80 = vmatprep.subr.mxu0 0.0
    %81 = vmatpush1.xpose.msra.mxu0 0.0
    %82 = vmatprep.subr.mxu0 0.0
    %83 = vmatpush1.xpose.msra.mxu0 0.0
    %84 = vmatprep.subr.mxu0 0.0
    %85 = vmatpush1.xpose.msra.mxu0 0.0
    %86 = vmatprep.subr.mxu0 0.0
    %87 = vmatpush1.xpose.msra.mxu0 0.0
    %88 = vmatprep.subr.mxu0 0.0
    %89 = vmatpush1.xpose.msra.mxu0 0.0
    %90 = vmatprep.subr.mxu0 0.0
    %91 = vmatpush1.xpose.msra.mxu0 0.0
    %92 = vmatprep.subr.mxu0 0.0
    %93 = vmatpush1.xpose.msra.mxu0 0.0
    %94 = vmatprep.subr.mxu0 0.0
    %95 = vmatpush1.xpose.msra.mxu0 0.0
    %96 = vmatprep.subr.mxu0 0.0
    %97 = vmatpush1.xpose.msra.mxu0 0.0
    %98 = vmatprep.subr.mxu0 0.0
    %99 = vmatpush1.xpose.msra.mxu0 0.0
    %100 = vmatprep.subr.mxu0 0.0
    %101 = vmatpush1.xpose.msra.mxu0 0.0
    %102 = vmatprep.subr.mxu0 0.0
    %103 = vmatpush1.xpose.msra.mxu0 0.0
    %104 = vmatprep.subr.mxu0 0.0
    %105 = vmatpush1.xpose.msra.mxu0 0.0
    %106 = vmatprep.subr.mxu0 0.0
    %107 = vmatpush1.xpose.msra.mxu0 0.0
    %108 = vmatprep.subr.mxu0 0.0
    %109 = vmatpush1.xpose.msra.mxu0 0.0
    %110 = vmatprep.subr.mxu0 0.0
    %111 = vmatpush1.xpose.msra.mxu0 0.0
    %112 = vmatprep.subr.mxu0 0.0
    %113 = vmatpush1.xpose.msra.mxu0 0.0
    %114 = vmatprep.subr.mxu0 0.0
    %115 = vmatpush1.xpose.msra.mxu0 0.0
    %116 = vmatprep.subr.mxu0 0.0
    %117 = vmatpush1.xpose.msra.mxu0 0.0
    %118 = vmatprep.subr.mxu0 0.0
    %119 = vmatpush1.xpose.msra.mxu0 0.0
    %120 = vmatprep.subr.mxu0 0.0
    %121 = vmatpush1.xpose.msra.mxu0 0.0
    %122 = vmatprep.subr.mxu0 0.0
    %123 = vmatpush1.xpose.msra.mxu0 0.0
    %124 = vmatprep.subr.mxu0 0.0
    %125 = vmatpush1.xpose.msra.mxu0 0.0
    %126 = vmatprep.subr.mxu0 0.0
    %127 = vmatpush1.xpose.msra.mxu0 0.0
    %128 = vmatprep.subr.mxu0 0.0
    %129 = vmatpush1.xpose.msra.mxu0 0.0
    %130 = vmatprep.subr.mxu0 0.0
    %131 = vmatpush1.xpose.msra.mxu0 0.0
    %132 = vmatprep.subr.mxu0 0.0
    %133 = vmatpush1.xpose.msra.mxu0 0.0
    %134 = vmatprep.subr.mxu0 0.0
    %135 = vmatpush1.xpose.msra.mxu0 0.0
    %136 = vmatprep.subr.mxu0 0.0
    %137 = vmatpush1.xpose.msra.mxu0 0.0
    %138 = vmatprep.subr.mxu0 0.0
    %139 = vmatpush1.xpose.msra.mxu0 0.0
    %140 = vmatprep.mubr.f32.mxu0 0.0
    %141 = vmatmul.mubr.f32.gmra.mrb[0].mxu0 %v74
    %v142 = vpop.f32.mrb[0].mxu0
    %v143 = vadd.f32 0.0, %v142
    %v144 = vpop.f32.mrb[0].mxu0
    %145 = vdwg.mxu0
    %v146 = vsub.f32 1.0, %v143
    %v147 = vld [vmem:[%s1] sm:$0xff]
    %v148 = vld [vmem:[%s2] sm:$0x1]
    %149 = vset.pattern.permute.xlu0 0
    %150 = vperm.xlu0 %149, %v147
    %v151 = vpop.permute.xlu0 %150
    %v152 = vlaneseq
    %v153 = vshrl.u32 %v152, 7
    %v154 = vsub.s32 0, %v153
    %v155 = vrot.slane %v148, %v154
    %vm156 = vcmp.eq.s32.totalorder %v151, %v155
    %v157 = vlaneseq
    %v158 = vand.u32 %v157, 127
    %vm159 = vcmp.lt.s32.totalorder %v158, 8
    %vm160 = vmand %vm156, %vm159
    %vm161 = vmxor %vm156, 1
    %vm162 = vmand %vm161, %vm159
    %v163 = vsel %vm160, %v146, -1e+08
    %vm164 = vcmask 64512
    %v165 = vsel %vm164, %v163, -inf
    %166 = vmax.xlane.f32.xlu0 %v165
    %v167 = vpop.xlane.xlu0 %166
    %v168 = vsel %vm162, %v146, 1e+08
    %v169 = vsel %vm164, %v168, inf
    %170 = vmin.xlane.f32.xlu0 %v169
    %v171 = vpop.xlane.xlu0 %170
    %v172 = vsub.f32 %v167, %v171
    %v173 = vadd.f32 %v172, 0.3
    %v174 = vmax.f32 %v173, 0.0
    %v175 = vlaneseq
    %v176 = vshrl.u32 %v175, 7
    %v177 = vstv %s72
    %v178 = vadd.s32 %v176, %v177
    %vm179 = vcmp.lt.s32.totalorder %v178, 8
    %v180 = vsel %vm179, %v174, 0.0
    %s181 = sld [smem:[#allocation3]]
    %vm182 = vcmask 7168
    %v183 = vsel %vm182, %v180, 0.0
    %184 = vadd.xlane.f32.xlu0 %v183
    %v185 = vpop.xlane.xlu0 %184
    %v186 = vrot.slane %v185, 4
    %v187 = vadd.f32 %v185, %v186
    %v188 = vrot.slane %v187, 2
    %v189 = vadd.f32 %v187, %v188
    %v190 = vrot.slane %v189, 1
    %v191 = vadd.f32 %v189, %v190
    %s192 = vtos %v191
    %s193 = sadd.f32 %s181, %s192
    %s194 = scalar_lea.smem [#allocation3], 0
    %195 = sst [smem:[%s194]] %s193
    // Predicated region
    $region48: #{tpu_custom_call.1} parent=1 // pred_check
      %p196 = pneg %p13
    $region49: #{tpu_custom_call.1} parent=1 // pred_check_branch
      %198 = sbr.rel (%p196) target = $region51
    $region50: #{tpu_custom_call.1} parent=1 // pred_region
      %s199 = sld [smem:[#allocation3]]
      %s200 = smul.f32 %s199, 0.125
      %s201 = scalar_lea.smem [#allocation5], 0
      %202 = sst [smem:[%s201]] %s200
    $region51: #{tpu_custom_call.1} parent=1 // pred_fallthru
      _
    // Predicated region
    $region52: #{tpu_custom_call.1} parent=1 // pred_check
      _
    $region53: #{tpu_custom_call.1} parent=1 // pred_check_branch
      %204 = sbr.rel (0) target = $region55
    $region54: #{tpu_custom_call.1} parent=1 // pred_region
      %s206 = ssub.s32 16, 16
      %207 = vsyncadd [#allocation6], %s206
      %210 = dma.smem_to_hbm [#allocation5], 16, %s3, [#allocation6]
    $region55: #{tpu_custom_call.1} parent=1 // pred_fallthru
      _
    // Predicated region
    $region56: #{tpu_custom_call.1} parent=1 // pred_check
      _
    $region57: #{tpu_custom_call.1} parent=1 // pred_check_branch
      %212 = sbr.rel (0) target = $region59
    $region58: #{tpu_custom_call.1} parent=1 // pred_region
      %213 = dma.done [#allocation6], 16
    $region59: #{tpu_custom_call.1} parent=1 // pred_fallthru
      _
    %214 = sfence
    %215 = vsyncpa [#allocation6], 1
  %216 = vsyncmov [#allocation4]
  %s217 = vpop.sfrf %216
  %p218 = scmp.eq.s32.totalorder %s217, 0
  %p219 = pneg %p218
  %221 = shalt.err (%p219)

</llo_original>
